<compile_context>
chip_gen: v5e
topology: v5e:2x2
jax: 0.10.0
libtpu: 0.0.40
codegen_flags: <defaults>
</compile_context>

<pallas_src>
import functools

import jax
import jax.numpy as jnp
from jax.experimental import pallas as pl
from jax.experimental.pallas import tpu as pltpu


def _round_up(x, m):
    return (x + m - 1) // m * m


def _cdiv(a, b):
    return -(-a // b)


# --------------------------------------------------------------------------- #
# Shared helper: accumulate per-channel sum / sum-of-squares of the conv tile,
# masking zero-padded pixel rows only on tiles that actually contain them.
# --------------------------------------------------------------------------- #
def _accumulate_stats(acc, sum_ref, sq_ref, g_tile, tm, npix, need_mask):
    if need_mask:
        has_pad = (g_tile + 1) * tm > npix

        @pl.when(has_pad)
        def _():
            row = g_tile * tm + jax.lax.broadcasted_iota(jnp.int32, (tm, 1), 0)
            am = jnp.where(row < npix, acc, 0.0)
            sum_ref[...] += jnp.sum(am, axis=0, keepdims=True)
            sq_ref[...] += jnp.sum(am * am, axis=0, keepdims=True)

        @pl.when(jnp.logical_not(has_pad))
        def _():
            sum_ref[...] += jnp.sum(acc, axis=0, keepdims=True)
            sq_ref[...] += jnp.sum(acc * acc, axis=0, keepdims=True)
    else:
        sum_ref[...] += jnp.sum(acc, axis=0, keepdims=True)
        sq_ref[...] += jnp.sum(acc * acc, axis=0, keepdims=True)


# --------------------------------------------------------------------------- #
# Pass 1 (recompute path): conv matmul -> global BN statistics only.
# --------------------------------------------------------------------------- #
def _stats_only_kernel(patch_ref, w_ref, sum_ref, sq_ref, *,
                       tiles_per_split, tm, npix, need_mask):
    c = pl.program_id(0)          # stat split (megacore-parallel on v7x)
    i = pl.program_id(1)          # pixel tile within this split (reduction)

    @pl.when(i == 0)
    def _():
        sum_ref[...] = jnp.zeros_like(sum_ref)
        sq_ref[...] = jnp.zeros_like(sq_ref)

    acc = jnp.dot(patch_ref[...], w_ref[...],
                  preferred_element_type=jnp.float32)
    _accumulate_stats(acc, sum_ref, sq_ref, c * tiles_per_split + i,
                      tm, npix, need_mask)


# --------------------------------------------------------------------------- #
# Pass 1 (store path, used when Kp >> Cp): conv matmul -> y slab + BN stats.
# --------------------------------------------------------------------------- #
def _conv_store_stats_kernel(patch_ref, w_ref, y_ref, sum_ref, sq_ref, *,
                             tiles_per_split, tm, npix, need_mask):
    c = pl.program_id(0)
    i = pl.program_id(1)

    @pl.when(i == 0)
    def _():
        sum_ref[...] = jnp.zeros_like(sum_ref)
        sq_ref[...] = jnp.zeros_like(sq_ref)

    acc = jnp.dot(patch_ref[...], w_ref[...],
                  preferred_element_type=jnp.float32)
    y_ref[...] = acc                                   # lane-dense f32 store
    _accumulate_stats(acc, sum_ref, sq_ref, c * tiles_per_split + i,
                      tm, npix, need_mask)


# --------------------------------------------------------------------------- #
# Pass 2 (recompute path): redo the matmul, then scale/shift + ReLU.
# --------------------------------------------------------------------------- #
def _conv_bn_relu_kernel(patch_ref, w_ref, scale_ref, shift_ref, o_ref):
    acc = jnp.dot(patch_ref[...], w_ref[...],
                  preferred_element_type=jnp.float32)
    o_ref[...] = jnp.maximum(acc * scale_ref[...] + shift_ref[...],
                             0.0).astype(o_ref.dtype)


# --------------------------------------------------------------------------- #
# Pass 2 (store path): read y slab, scale/shift + ReLU.
# --------------------------------------------------------------------------- #
def _bn_relu_kernel(y_ref, scale_ref, shift_ref, o_ref):
    o_ref[...] = jnp.maximum(y_ref[...] * scale_ref[...] + shift_ref[...],
                             0.0).astype(o_ref.dtype)


# --------------------------------------------------------------------------- #
# Wrapper: _ASPPModule.forward for an NCHW float32 input.
# --------------------------------------------------------------------------- #
def aspp_module_forward(x_nchw, weight_oihw, gamma, beta, *,
                        padding, dilation, eps=1e-5, tile_rows=2048,
                        use_bf16=False, num_stat_splits=2,
                        force_store_y=None):
    N, Cin, H, W = x_nchw.shape
    Cout, Cin_w, KH, KW = weight_oihw.shape
    assert Cin == Cin_w

    Ho = H + 2 * padding - dilation * (KH - 1)          # stride = 1
    Wo = W + 2 * padding - dilation * (KW - 1)
    npix = N * Ho * Wo
    K = KH * KW * Cin

    Kp = _round_up(K, 8)                                # contraction (sublane) dim
    Cp = _round_up(Cout, 128)                           # lane-dense channel dim

    # Pixel tile: as large as possible (fewer grid steps, longer DMAs) while
    # the double-buffered tiles stay inside a conservative VMEM budget.
    vmem_budget = 24 * 1024 * 1024
    bytes_per_row = 4 * (Kp + Cp)
    max_rows = max(8, (vmem_budget - 2 * 4 * Kp * Cp) // (2 * bytes_per_row))
    TM = _round_up(max(8, min(tile_rows, _cdiv(npix, num_stat_splits),
                              max_rows)), 8)
    npix_pad = _round_up(npix, num_stat_splits * TM)
    tiles_per_split = npix_pad // (num_stat_splits * TM)
    n_tiles = npix_pad // TM
    need_mask = npix_pad != npix

    # Recompute the matmul in pass 2 (no y round-trip) only while the patch
    # slab (width Kp) is not wider than the output slab (width Cp); for real
    # ASPP shapes (Kp = 9*Cin >> Cout) the y round-trip is cheaper.
    store_y = (Kp > Cp) if force_store_y is None else force_store_y

    mm_dtype = jnp.bfloat16 if use_bf16 else jnp.float32

    # ---- wrapper glue (plain JAX): layout + zero-pad + im2col -------------- #
    x_nhwc = jnp.transpose(x_nchw, (0, 2, 3, 1)).astype(jnp.float32)
    xp = jnp.pad(x_nhwc,
                 ((0, 0), (padding, padding), (padding, padding), (0, 0)))
    taps = [xp[:, kh * dilation: kh * dilation + Ho,
               kw * dilation: kw * dilation + Wo, :]
            for kh in range(KH) for kw in range(KW)]
    patches = jnp.concatenate(taps, axis=-1).reshape(npix, K)
    patches = jnp.pad(patches,
                      ((0, npix_pad - npix), (0, Kp - K))).astype(mm_dtype)

    w2d = jnp.transpose(weight_oihw, (2, 3, 1, 0)).reshape(K, Cout)
    w2d = jnp.pad(w2d.astype(jnp.float32),
                  ((0, Kp - K), (0, Cp - Cout))).astype(mm_dtype)

    gamma_p = jnp.pad(gamma.astype(jnp.float32), (0, Cp - Cout))
    beta_p = jnp.pad(beta.astype(jnp.float32), (0, Cp - Cout))

    vmem_limit = 32 * 1024 * 1024
    cparams_p1 = pltpu.CompilerParams(
        dimension_semantics=("parallel", "arbitrary"),
        vmem_limit_bytes=vmem_limit)
    cparams_p2 = pltpu.CompilerParams(
        dimension_semantics=("parallel",),
        vmem_limit_bytes=vmem_limit)

    def _pix_map(t):
        return lambda c, i: (c * t + i, 0)

    stats_shape = jax.ShapeDtypeStruct((num_stat_splits, 1, Cp), jnp.float32)
    stats_spec = pl.BlockSpec((None, 1, Cp), lambda c, i: (c, 0, 0))
    patch_spec_p1 = pl.BlockSpec((TM, Kp), _pix_map(tiles_per_split))
    w_spec_p1 = pl.BlockSpec((Kp, Cp), lambda c, i: (0, 0))

    p1_kwargs = dict(tiles_per_split=tiles_per_split, tm=TM,
                     npix=npix, need_mask=need_mask)

    # ---- pass 1: conv matmul + global BN statistics ------------------------ #
    if store_y:
        kernel1 = functools.partial(_conv_store_stats_kernel, **p1_kwargs)
        y2d, csum_parts, csq_parts = pl.pallas_call(
            kernel1,
            out_shape=(jax.ShapeDtypeStruct((npix_pad, Cp), jnp.float32),
                       stats_shape, stats_shape),
            grid=(num_stat_splits, tiles_per_split),
            in_specs=[patch_spec_p1, w_spec_p1],
            out_specs=(pl.BlockSpec((TM, Cp), _pix_map(tiles_per_split)),
                       stats_spec, stats_spec),
            compiler_params=cparams_p1,
        )(patches, w2d)
    else:
        kernel1 = functools.partial(_stats_only_kernel, **p1_kwargs)
        csum_parts, csq_parts = pl.pallas_call(
            kernel1,
            out_shape=(stats_shape, stats_shape),
            grid=(num_stat_splits, tiles_per_split),
            in_specs=[patch_spec_p1, w_spec_p1],
            out_specs=(stats_spec, stats_spec),
            compiler_params=cparams_p1,
        )(patches, w2d)
        y2d = None

    # ---- tiny (Cp,) wrapper math: combine splits, fold BN into scale/shift - #
    csum = jnp.sum(csum_parts[:, 0, :], axis=0)
    csq = jnp.sum(csq_parts[:, 0, :], axis=0)
    inv_n = jnp.float32(1.0 / npix)
    mean = csum * inv_n
    var = csq * inv_n - mean * mean     # single-pass variance; OK at 1e-4 here
    inv = jax.lax.rsqrt(var + eps)
    scale = (gamma_p * inv).reshape(1, Cp)
    shift = (beta_p - mean * gamma_p * inv).reshape(1, Cp)

    vec_spec = pl.BlockSpec((1, Cp), lambda i: (0, 0))
    out_spec = pl.BlockSpec((TM, Cp), lambda i: (i, 0))

    # ---- pass 2: normalize + ReLU (lane-dense output) ----------------------- #
    if store_y:
        out2d = pl.pallas_call(
            _bn_relu_kernel,
            out_shape=jax.ShapeDtypeStruct((npix_pad, Cp), x_nchw.dtype),
            grid=(n_tiles,),
            in_specs=[pl.BlockSpec((TM, Cp), lambda i: (i, 0)),
                      vec_spec, vec_spec],
            out_specs=out_spec,
            compiler_params=cparams_p2,
        )(y2d, scale, shift)
    else:
        out2d = pl.pallas_call(
            _conv_bn_relu_kernel,
            out_shape=jax.ShapeDtypeStruct((npix_pad, Cp), x_nchw.dtype),
            grid=(n_tiles,),
            in_specs=[pl.BlockSpec((TM, Kp), lambda i: (i, 0)),
                      pl.BlockSpec((Kp, Cp), lambda i: (0, 0)),
                      vec_spec, vec_spec],
            out_specs=out_spec,
            compiler_params=cparams_p2,
        )(patches, w2d, scale, shift)

    out_nhwc = out2d[:npix, :Cout].reshape(N, Ho, Wo, Cout)
    return jnp.transpose(out_nhwc, (0, 3, 1, 2))        # back to NCHW


# --------------------------------------------------------------------------- #
# Pure-JAX reference (conv + train-mode BN + ReLU) for validation.
# --------------------------------------------------------------------------- #
def _reference(x_nchw, weight_oihw, gamma, beta, *, padding, dilation, eps=1e-5):
    y = jax.lax.conv_general_dilated(
        x_nchw, weight_oihw, window_strides=(1, 1),
        padding=((padding, padding), (padding, padding)),
        rhs_dilation=(dilation, dilation),
        dimension_numbers=("NCHW", "OIHW", "NCHW"))
    mean = jnp.mean(y, axis=(0, 2, 3), keepdims=True)
    var = jnp.mean((y - mean) ** 2, axis=(0, 2, 3), keepdims=True)
    yn = (y - mean) * jax.lax.rsqrt(var + eps)
    yn = yn * gamma.reshape(1, -1, 1, 1) + beta.reshape(1, -1, 1, 1)
    return jnp.maximum(yn, 0.0)


if __name__ == "__main__":
    key = jax.random.PRNGKey(0)
    kx, kw, kx2, kw2 = jax.random.split(key, 4)

    # Small ASPP branch: inplanes=4, planes=8, kernel_size=3, padding=dilation=2.
    N, Cin, H, W = 2, 4, 16, 16
    Cout, KH, KW = 8, 3, 3
    padding, dilation = 2, 2

    x = jax.random.normal(kx, (N, Cin, H, W), jnp.float32)

    # _init_weight(): conv kaiming_normal_ (std = sqrt(2/fan_in)); BN gamma=1, beta=0.
    fan_in = Cin * KH * KW
    weight = (jax.random.normal(kw, (Cout, Cin, KH, KW), jnp.float32)
              * jnp.sqrt(2.0 / fan_in))
    gamma = jnp.ones((Cout,), jnp.float32)
    beta = jnp.zeros((Cout,), jnp.float32)

    ref = jax.block_until_ready(
        _reference(x, weight, gamma, beta, padding=padding, dilation=dilation))

    # Default path: stats-only pass 1 + matmul recompute in pass 2 (no y round-trip).
    out = jax.block_until_ready(
        aspp_module_forward(x, weight, gamma, beta,
                            padding=padding, dilation=dilation))
    assert out.shape == (N, Cout, H, W)
    assert jnp.max(jnp.abs(out - ref)) < 1e-4, "mismatch vs. JAX reference (recompute)"

    # y-store path (the structure auto-selected for real ASPP shapes, Kp >> Cp).
    out_store = jax.block_until_ready(
        aspp_module_forward(x, weight, gamma, beta, padding=padding,
                            dilation=dilation, force_store_y=True))
    assert jnp.max(jnp.abs(out_store - ref)) < 1e-4, "mismatch vs. JAX reference (store-y)"

    # bf16 operand path (f32 accumulate): numerics move past 1e-4 by design.
    out_bf16 = jax.block_until_ready(
        aspp_module_forward(x, weight, gamma, beta, padding=padding,
                            dilation=dilation, use_bf16=True))
    assert jnp.max(jnp.abs(out_bf16 - ref)) < 5e-2, "mismatch vs. JAX reference (bf16)"

    # Odd spatial size so the padded-row mask (pl.when) path is exercised.
    N2, H2, W2, pad2, dil2 = 1, 15, 15, 1, 1
    x2 = jax.random.normal(kx2, (N2, Cin, H2, W2), jnp.float32)
    weight2 = (jax.random.normal(kw2, (Cout, Cin, KH, KW), jnp.float32)
               * jnp.sqrt(2.0 / fan_in))
    ref2 = jax.block_until_ready(
        _reference(x2, weight2, gamma, beta, padding=pad2, dilation=dil2))
    out2 = jax.block_until_ready(
        aspp_module_forward(x2, weight2, gamma, beta, padding=pad2, dilation=dil2))
    assert out2.shape == (N2, Cout, H2, W2)
    assert jnp.max(jnp.abs(out2 - ref2)) < 1e-4, "mismatch vs. JAX reference (masked)"

    print("KERNEL_OK")
</pallas_src>

<mosaic_0001>
module attributes {stable_mosaic.version = 11 : i64} {
  func.func @_stats_only_kernel(%arg0: i32, %arg1: i32, %arg2: memref<256x40xf32, #tpu.memory_space<vmem>>, %arg3: memref<40x128xf32, #tpu.memory_space<vmem>>, %arg4: memref<1x1x128xf32, #tpu.memory_space<vmem>>, %arg5: memref<1x1x128xf32, #tpu.memory_space<vmem>>) attributes {dimension_semantics = [#tpu.dimension_semantics<parallel>, #tpu.dimension_semantics<arbitrary>], iteration_bounds = array<i64: 2, 1>, scalar_prefetch = 0 : i64, scratch_operands = 0 : i64, tpu.core_type = #tpu.core_type<tc>, window_params = [{transform_indices = @transform_0, window_bounds = array<i64: 256, 40>}, {pipeline_mode = #tpu.pipeline_mode<synchronous>, transform_indices = @transform_1, window_bounds = array<i64: 40, 128>}, {transform_indices = @transform_2, window_bounds = array<i64: 1, 1, 128>}, {transform_indices = @transform_3, window_bounds = array<i64: 1, 1, 128>}]} {
    %c0_i32 = arith.constant 0 : i32
    %0 = arith.cmpi eq, %arg1, %c0_i32 : i32
    %1 = arith.extui %0 : i1 to i32
    %c0_i32_0 = arith.constant 0 : i32
    %2 = arith.cmpi ne, %1, %c0_i32_0 : i32
    scf.if %2 {
      %cst_18 = arith.constant 0.000000e+00 : f32
      %23 = vector.broadcast %cst_18 : f32 to vector<1x128xf32>
      %c0_19 = arith.constant 0 : index
      %c0_20 = arith.constant 0 : index
      %c0_21 = arith.constant 0 : index
      %24 = vector.load %arg4[%c0_19, %c0_20, %c0_21] : memref<1x1x128xf32, #tpu.memory_space<vmem>>, vector<1x1x128xf32>
      %25 = vector.shape_cast %24 : vector<1x1x128xf32> to vector<1x128xf32>
      %26 = vector.shape_cast %23 : vector<1x128xf32> to vector<1x1x128xf32>
      tpu.vector_store %arg4[%c0_19, %c0_20, %c0_21], %26 {strides = array<i32>} : memref<1x1x128xf32, #tpu.memory_space<vmem>>, vector<1x1x128xf32>,
      %cst_22 = arith.constant 0.000000e+00 : f32
      %27 = vector.broadcast %cst_22 : f32 to vector<1x128xf32>
      %c0_23 = arith.constant 0 : index
      %c0_24 = arith.constant 0 : index
      %c0_25 = arith.constant 0 : index
      %28 = vector.load %arg5[%c0_23, %c0_24, %c0_25] : memref<1x1x128xf32, #tpu.memory_space<vmem>>, vector<1x1x128xf32>
      %29 = vector.shape_cast %28 : vector<1x1x128xf32> to vector<1x128xf32>
      %30 = vector.shape_cast %27 : vector<1x128xf32> to vector<1x1x128xf32>
      tpu.vector_store %arg5[%c0_23, %c0_24, %c0_25], %30 {strides = array<i32>} : memref<1x1x128xf32, #tpu.memory_space<vmem>>, vector<1x1x128xf32>,
    } else {
    }
    %c0 = arith.constant 0 : index
    %c0_1 = arith.constant 0 : index
    %3 = vector.load %arg2[%c0, %c0_1] : memref<256x40xf32, #tpu.memory_space<vmem>>, vector<256x40xf32>
    %c0_2 = arith.constant 0 : index
    %c0_3 = arith.constant 0 : index
    %4 = vector.load %arg3[%c0_2, %c0_3] : memref<40x128xf32, #tpu.memory_space<vmem>>, vector<40x128xf32>
    %cst = arith.constant dense<0.000000e+00> : vector<256x128xf32>
    %5 = tpu.matmul %3, %4, %cst {dimension_numbers = #tpu.dot_dimension_numbers<[1], [0], [0], [1], [0, 0, 1, 1], [], []>} : vector<256x40xf32>, vector<40x128xf32>, vector<256x128xf32> -> vector<256x128xf32>
    %c0_4 = arith.constant 0 : index
    %c0_5 = arith.constant 0 : index
    %c0_6 = arith.constant 0 : index
    %6 = vector.load %arg4[%c0_4, %c0_5, %c0_6] : memref<1x1x128xf32, #tpu.memory_space<vmem>>, vector<1x1x128xf32>
    %7 = vector.shape_cast %6 : vector<1x1x128xf32> to vector<1x128xf32>
    %cst_7 = arith.constant dense<0.000000e+00> : vector<128xf32>
    %8 = vector.multi_reduction <add>, %5, %cst_7 [0] : vector<256x128xf32> to vector<128xf32>
    %9 = vector.shape_cast %8 : vector<128xf32> to vector<1x128xf32>
    %10 = arith.addf %7, %9 : vector<1x128xf32>
    %c0_8 = arith.constant 0 : index
    %c0_9 = arith.constant 0 : index
    %c0_10 = arith.constant 0 : index
    %11 = vector.load %arg4[%c0_8, %c0_9, %c0_10] : memref<1x1x128xf32, #tpu.memory_space<vmem>>, vector<1x1x128xf32>
    %12 = vector.shape_cast %11 : vector<1x1x128xf32> to vector<1x128xf32>
    %13 = vector.shape_cast %10 : vector<1x128xf32> to vector<1x1x128xf32>
    tpu.vector_store %arg4[%c0_8, %c0_9, %c0_10], %13 {strides = array<i32>} : memref<1x1x128xf32, #tpu.memory_space<vmem>>, vector<1x1x128xf32>,
    %c0_11 = arith.constant 0 : index
    %c0_12 = arith.constant 0 : index
    %c0_13 = arith.constant 0 : index
    %14 = vector.load %arg5[%c0_11, %c0_12, %c0_13] : memref<1x1x128xf32, #tpu.memory_space<vmem>>, vector<1x1x128xf32>
    %15 = vector.shape_cast %14 : vector<1x1x128xf32> to vector<1x128xf32>
    %16 = arith.mulf %5, %5 : vector<256x128xf32>
    %cst_14 = arith.constant dense<0.000000e+00> : vector<128xf32>
    %17 = vector.multi_reduction <add>, %16, %cst_14 [0] : vector<256x128xf32> to vector<128xf32>
    %18 = vector.shape_cast %17 : vector<128xf32> to vector<1x128xf32>
    %19 = arith.addf %15, %18 : vector<1x128xf32>
    %c0_15 = arith.constant 0 : index
    %c0_16 = arith.constant 0 : index
    %c0_17 = arith.constant 0 : index
    %20 = vector.load %arg5[%c0_15, %c0_16, %c0_17] : memref<1x1x128xf32, #tpu.memory_space<vmem>>, vector<1x1x128xf32>
    %21 = vector.shape_cast %20 : vector<1x1x128xf32> to vector<1x128xf32>
    %22 = vector.shape_cast %19 : vector<1x128xf32> to vector<1x1x128xf32>
    tpu.vector_store %arg5[%c0_15, %c0_16, %c0_17], %22 {strides = array<i32>} : memref<1x1x128xf32, #tpu.memory_space<vmem>>, vector<1x1x128xf32>,
    return
  }
  func.func @transform_0(%arg0: i32, %arg1: i32) -> (i32, i32) {
    %c1_i32 = arith.constant 1 : i32
    %0 = arith.muli %arg0, %c1_i32 : i32
    %1 = arith.addi %0, %arg1 : i32
    %c0_i32 = arith.constant 0 : i32
    %c0_i32_0 = arith.constant 0 : i32
    return %1, %c0_i32 : i32, i32
  }
  func.func @transform_1(%arg0: i32, %arg1: i32) -> (i32, i32) {
    %c0_i32 = arith.constant 0 : i32
    %c0_i32_0 = arith.constant 0 : i32
    %c0_i32_1 = arith.constant 0 : i32
    return %c0_i32, %c0_i32_0 : i32, i32
  }
  func.func @transform_2(%arg0: i32, %arg1: i32) -> (i32, i32, i32) {
    %c0_i32 = arith.constant 0 : i32
    %c0_i32_0 = arith.constant 0 : i32
    %c0_i32_1 = arith.constant 0 : i32
    return %arg0, %c0_i32, %c0_i32_0 : i32, i32, i32
  }
  func.func @transform_3(%arg0: i32, %arg1: i32) -> (i32, i32, i32) {
    %c0_i32 = arith.constant 0 : i32
    %c0_i32_0 = arith.constant 0 : i32
    %c0_i32_1 = arith.constant 0 : i32
    return %arg0, %c0_i32, %c0_i32_0 : i32, i32, i32
  }
}

</mosaic_0001>

<llo_original>
// kernel: tpu_custom_call.1
$region0: #{tpu_custom_call.1}
  #allocation0 [shape = 'u32[]', space=smem, size = 0x4, offset = 0x4, fixed_abs, tag = 'smem constant byte address 0x4 - core index']
  #allocation1 [shape = 'u32[72,128]{1,0:T(1,128)}', space=vmem, size = 0x9000, scoped, tag = 'internal scratch']
  %s0 = inlined_call_operand.vmem [shape: f32[512,40], index: 0, kind: input, shape index: {}]
  %s1 = inlined_call_operand.vmem [shape: f32[40,128], index: 1, kind: input, shape index: {}]
  %s2 = inlined_call_operand.hbm [shape: f32[2,1,128], index: 2, kind: output, shape index: {0}]
  %s3 = inlined_call_operand.hbm [shape: f32[2,1,128], index: 3, kind: output, shape index: {1}]
  %4 = xla_tuple %s2, %s3
  %s5 = sld [smem:[#allocation0]]
  $region53: #{tpu_custom_call.1} parent=0
    _
  %s7 = ssub.s32 1, %s5
  %s8 = scalar_select 0, %s7, %s5
  $region1: #{tpu_custom_call.1} parent=0
    #allocation2 [shape = 'u8[1024]{0}', space=vmem, size = 0x400, scoped, tag = 'output window, operand 0']
    #allocation3 [shape = 's32[2]{0}', space=sflag, size = 0x8, scoped, tag = 'scoped memory for tpu_custom_call.1']
    #allocation4 [shape = 'u8[1024]{0}', space=vmem, size = 0x400, scoped, tag = 'output window, operand 1']
    #allocation5 [shape = 's32[2]{0}', space=sflag, size = 0x8, scoped, tag = 'scoped memory for tpu_custom_call.1']
    %9 = vsyncpa [#allocation3], 0
    %s10 = scalar_lea.sflag [#allocation3], 1
    %11 = vsyncpa %s10, 0
    %12 = vsyncpa [#allocation5], 0
    %s13 = scalar_lea.sflag [#allocation5], 1
    %14 = vsyncpa %s13, 0
    loop: start=0, step=1, limit=4
    $region2: #{tpu_custom_call.1} parent=1 // loop_pre_header
      _
    $region3: #{tpu_custom_call.1} parent=1 // loop_header
      %s16 = sphi 0, %s20
      %p17 = scmp.ge.s32.totalorder %s16, 4
      %s23 = sphi 0, %s35
      %s24 = sphi 0, %s31
      %s25 = sphi 0, %s23
      %s26 = sphi 0, %s24
      %s27 = sphi 0, %s25
      %s28 = sphi 0, %s26
      %s40 = sphi 0, %s42
      %s43 = sphi 0, %s40
      %s44 = sphi 0, %s43
      %s60 = sphi 0, %s44
      %s64 = sphi 0, %s64
      %s66 = sphi 0, %s64
      %s67 = sphi 0, %s66
      %s81 = sphi 0, %s67
      %s87 = sphi 0, %s89
      %s90 = sphi 0, %s87
      %s91 = sphi 0, %s90
      %s107 = sphi 0, %s91
      %s113 = sphi 0, %s115
      %s116 = sphi 0, %s113
      %s117 = sphi 0, %s116
      %s133 = sphi 0, %s117
    $region4: #{tpu_custom_call.1} parent=1 // loop_header_branch
      %19 = sbr.rel (%p17) target = $region8
    $region5: #{tpu_custom_call.1} parent=1 // loop_body
      %s21 = ssub.s32 %s16, 1
      %s22 = ssub.s32 %s16, 2
      %s29 = sadd.s32 1, %s24
      %p30 = scmp.ge.s32.totalorder %s29, 1
      %s31 = scalar_select %p30, 0, %s29
      %s32 = sadd.s32 1, %s23
      %s33 = scalar_select %p30, %s32, %s23
      %p34 = scmp.ge.s32.totalorder %s33, 2
      %s35 = scalar_select %p34, 0, %s33
      %s36 = sadd.s32 %s23, %s24
      %s37 = sadd.s32 %s35, %s31
      %s38 = ssub.s32 %s36, %s37
      %p39 = scmp.eq.s32.totalorder %s38, 0
      %s41 = sadd.s32 %s40, 1
      %s42 = scalar_select %p39, %s40, %s41
      %p45 = pneg %p39
      %p46 = scmp.eq.s32.totalorder %s16, 1
      %p47 = por %p45, %p46
      %p48 = scmp.ne.s32.totalorder %s40, %s43
      %p49 = scmp.eq.s32.totalorder %s16, 0
      %p50 = por %p48, %p49
      %p51 = scmp.ne.s32.totalorder %s40, %s43
      %p52 = scmp.eq.s32.totalorder %s21, 1
      %p53 = por %p51, %p52
      %p54 = scmp.ne.s32.totalorder %s43, %s44
      %p55 = scmp.eq.s32.totalorder %s21, 0
      %p56 = por %p54, %p55
      %p57 = scmp.ne.s32.totalorder %s43, %s44
      %p58 = scmp.eq.s32.totalorder %s22, 1
      %p59 = por %p57, %p58
      %p61 = scmp.ne.s32.totalorder %s44, %s60
      %p62 = scmp.eq.s32.totalorder %s22, 0
      %p63 = por %p61, %p62
      %s65 = sadd.s32 %s64, 1
      %p68 = scmp.eq.s32.totalorder %s16, 1
      %p69 = scmp.ne.s32.totalorder %s64, %s66
      %p70 = scmp.eq.s32.totalorder %s16, 0
      %p71 = por %p69, %p70
      %p72 = scmp.ne.s32.totalorder %s64, %s66
      %p73 = scmp.eq.s32.totalorder %s21, 1
      %p74 = por %p72, %p73
      %p75 = scmp.ne.s32.totalorder %s66, %s67
      %p76 = scmp.eq.s32.totalorder %s21, 0
      %p77 = por %p75, %p76
      %p78 = scmp.ne.s32.totalorder %s66, %s67
      %p79 = scmp.eq.s32.totalorder %s22, 1
      %p80 = por %p78, %p79
      %p82 = scmp.ne.s32.totalorder %s67, %s81
      %p83 = scmp.eq.s32.totalorder %s22, 0
      %p84 = por %p82, %p83
      %s85 = ssub.s32 %s23, %s35
      %p86 = scmp.eq.s32.totalorder %s85, 0
      %s88 = sadd.s32 %s87, 1
      %s89 = scalar_select %p86, %s87, %s88
      %p92 = pneg %p86
      %p93 = scmp.eq.s32.totalorder %s16, 1
      %p94 = por %p92, %p93
      %p95 = scmp.ne.s32.totalorder %s87, %s90
      %p96 = scmp.eq.s32.totalorder %s16, 0
      %p97 = por %p95, %p96
      %p98 = scmp.ne.s32.totalorder %s87, %s90
      %p99 = scmp.eq.s32.totalorder %s21, 1
      %p100 = por %p98, %p99
      %p101 = scmp.ne.s32.totalorder %s90, %s91
      %p102 = scmp.eq.s32.totalorder %s21, 0
      %p103 = por %p101, %p102
      %p104 = scmp.ne.s32.totalorder %s90, %s91
      %p105 = scmp.eq.s32.totalorder %s22, 1
      %p106 = por %p104, %p105
      %p108 = scmp.ne.s32.totalorder %s91, %s107
      %p109 = scmp.eq.s32.totalorder %s22, 0
      %p110 = por %p108, %p109
      %s111 = ssub.s32 %s23, %s35
      %p112 = scmp.eq.s32.totalorder %s111, 0
      %s114 = sadd.s32 %s113, 1
      %s115 = scalar_select %p112, %s113, %s114
      %p118 = pneg %p112
      %p119 = scmp.eq.s32.totalorder %s16, 1
      %p120 = por %p118, %p119
      %p121 = scmp.ne.s32.totalorder %s113, %s116
      %p122 = scmp.eq.s32.totalorder %s16, 0
      %p123 = por %p121, %p122
      %p124 = scmp.ne.s32.totalorder %s113, %s116
      %p125 = scmp.eq.s32.totalorder %s21, 1
      %p126 = por %p124, %p125
      %p127 = scmp.ne.s32.totalorder %s116, %s117
      %p128 = scmp.eq.s32.totalorder %s21, 0
      %p129 = por %p127, %p128
      %p130 = scmp.ne.s32.totalorder %s116, %s117
      %p131 = scmp.eq.s32.totalorder %s22, 1
      %p132 = por %p130, %p131
      %p134 = scmp.ne.s32.totalorder %s117, %s133
      %p135 = scmp.eq.s32.totalorder %s22, 0
      %p136 = por %p134, %p135
      %p137 = scmp.le.s32.totalorder 1, %s16
      %p138 = scmp.lt.s32.totalorder %s16, 3
      %p139 = pnand %p137, %p138
      %p140 = pneg %p139
      // Predicated region
      $region9: #{tpu_custom_call.1} parent=5 // pred_check
        _
      $region10: #{tpu_custom_call.1} parent=5 // pred_check_branch
        %142 = sbr.rel (%p139) target = $region12
      $region11: #{tpu_custom_call.1} parent=5 // pred_region
        %s143 = ssub.s32 %s16, 1
        // Predicated region
        $region13: #{tpu_custom_call.1} parent=11 // pred_check
          %p144 = pneg %p77
        $region14: #{tpu_custom_call.1} parent=11 // pred_check_branch
          %146 = sbr.rel (%p144) target = $region16
        $region15: #{tpu_custom_call.1} parent=11 // pred_region
          _
        $region16: #{tpu_custom_call.1} parent=11 // pred_fallthru
          _
      $region12: #{tpu_custom_call.1} parent=5 // pred_fallthru
        _
      %p147 = scmp.lt.s32.totalorder %s16, 2
      // Predicated region
      $region17: #{tpu_custom_call.1} parent=5 // pred_check
        %p148 = pneg %p147
      $region18: #{tpu_custom_call.1} parent=5 // pred_check_branch
        %150 = sbr.rel (%p148) target = $region20
      $region19: #{tpu_custom_call.1} parent=5 // pred_region
        // Predicated region
        $region21: #{tpu_custom_call.1} parent=19 // pred_check
          %p151 = pneg %p50
        $region22: #{tpu_custom_call.1} parent=19 // pred_check_branch
          %153 = sbr.rel (%p151) target = $region24
        $region23: #{tpu_custom_call.1} parent=19 // pred_region
          %s154 = sadd.s32 %s23, %s24
          %s155 = smul.u32 32, %s154
          %p156 = scmp.lt.s32.totalorder %s155, 63
          %s157 = scalar_select %p156, %s155, 63
          %s158 = smul.addr %s157, 8
          %s159 = scalar_lea.vmem %s0, %s158
          %s160 = sadd.s32 %s23, %s24
          %s161 = smul.u32 32, %s160
        $region24: #{tpu_custom_call.1} parent=19 // pred_fallthru
          _
      $region20: #{tpu_custom_call.1} parent=5 // pred_fallthru
        _
      %p162 = scmp.le.s32.totalorder 1, %s16
      %p163 = scmp.lt.s32.totalorder %s16, 3
      %p164 = pnand %p162, %p163
      %p165 = pneg %p164
      // Predicated region
      $region25: #{tpu_custom_call.1} parent=5 // pred_check
        _
      $region26: #{tpu_custom_call.1} parent=5 // pred_check_branch
        %167 = sbr.rel (%p164) target = $region28
      $region27: #{tpu_custom_call.1} parent=5 // pred_region
        %s168 = ssub.s32 %s16, 1
        %s169 = sadd.s32 %s25, %s26
        %s170 = smul.u32 32, %s169
        %p171 = scmp.lt.s32.totalorder %s170, 63
        %s172 = scalar_select %p171, %s170, 63
        %s173 = smul.addr %s172, 8
        %s174 = scalar_lea.vmem %s0, %s173
        %p175 = pneg %p56
        %p176 = pneg %p53
        %p177 = pneg %p77
        %p178 = pneg %p74
        %p179 = pneg %p103
        %p180 = pneg %p100
        %s181 = sand.u32 %s90, 1
        %s182 = scalar_lea.sflag [#allocation3], %s181
        %s183 = sand.u32 %s90, 1
        %s184 = scalar_lea.vmem [#allocation2], %s183
        %p185 = pneg %p129
        %p186 = pneg %p126
        %s187 = sand.u32 %s116, 1
        %s188 = scalar_lea.sflag [#allocation5], %s187
        %s189 = sand.u32 %s116, 1
        %s190 = scalar_lea.vmem [#allocation4], %s189
        %s191 = sadd.s32 %s25, %s26
        %s192 = smul.u32 32, %s191
        %p193 = scmp.lt.s32.totalorder %s192, 63
        %s194 = scalar_select %p193, %s192, 63
        %s195 = smul.addr %s194, 8
        %s196 = scalar_lea.vmem %s0, %s195
        %s197 = sadd.s32 %s25, %s26
        %s198 = smul.u32 32, %s197
        %p199 = scmp.eq.s32.totalorder %s26, 0
        // Predicated region
        $region29: #{tpu_custom_call.1} parent=27 // pred_check
          %p200 = pneg %p199
        $region30: #{tpu_custom_call.1} parent=27 // pred_check_branch
          %202 = sbr.rel (%p200) target = $region32
        $region31: #{tpu_custom_call.1} parent=27 // pred_region
          %203 = vst [vmem:[%s184] sm:$0x1] 0.0
          %204 = vst [vmem:[%s190] sm:$0x1] 0.0
        $region32: #{tpu_custom_call.1} parent=27 // pred_fallthru
          _
        %v205 = vld [vmem:[%s196] sm:$0xff]
        %v206 = vld [vmem:[%s196 + $0x8] sm:$0xff]
        %v207 = vld [vmem:[%s196 + $0x10] sm:$0xff]
        %v208 = vld [vmem:[%s196 + $0x18] sm:$0xff]
        %v209 = vld [vmem:[%s196 + $0x20] sm:$0xff]
        %v210 = vld [vmem:[%s196 + $0x28] sm:$0xff]
        %v211 = vld [vmem:[%s196 + $0x30] sm:$0xff]
        %v212 = vld [vmem:[%s196 + $0x38] sm:$0xff]
        %v213 = vld [vmem:[%s196 + $0x40] sm:$0xff]
        %v214 = vld [vmem:[%s196 + $0x48] sm:$0xff]
        %v215 = vld [vmem:[%s196 + $0x50] sm:$0xff]
        %v216 = vld [vmem:[%s196 + $0x58] sm:$0xff]
        %v217 = vld [vmem:[%s196 + $0x60] sm:$0xff]
        %v218 = vld [vmem:[%s196 + $0x68] sm:$0xff]
        %v219 = vld [vmem:[%s196 + $0x70] sm:$0xff]
        %v220 = vld [vmem:[%s196 + $0x78] sm:$0xff]
        %v221 = vld [vmem:[%s196 + $0x80] sm:$0xff]
        %v222 = vld [vmem:[%s196 + $0x88] sm:$0xff]
        %v223 = vld [vmem:[%s196 + $0x90] sm:$0xff]
        %v224 = vld [vmem:[%s196 + $0x98] sm:$0xff]
        %v225 = vld [vmem:[%s196 + $0xa0] sm:$0xff]
        %v226 = vld [vmem:[%s196 + $0xa8] sm:$0xff]
        %v227 = vld [vmem:[%s196 + $0xb0] sm:$0xff]
        %v228 = vld [vmem:[%s196 + $0xb8] sm:$0xff]
        %v229 = vld [vmem:[%s196 + $0xc0] sm:$0xff]
        %v230 = vld [vmem:[%s196 + $0xc8] sm:$0xff]
        %v231 = vld [vmem:[%s196 + $0xd0] sm:$0xff]
        %v232 = vld [vmem:[%s196 + $0xd8] sm:$0xff]
        %v233 = vld [vmem:[%s196 + $0xe0] sm:$0xff]
        %v234 = vld [vmem:[%s196 + $0xe8] sm:$0xff]
        %v235 = vld [vmem:[%s196 + $0xf0] sm:$0xff]
        %v236 = vld [vmem:[%s196 + $0xf8] sm:$0xff]
        %v237 = vld [vmem:[%s1] sm:$0xff]
        %v238 = vld [vmem:[%s1 + $0x8] sm:$0xff]
        %v239 = vld [vmem:[%s1 + $0x10] sm:$0xff]
        %v240 = vld [vmem:[%s1 + $0x18] sm:$0xff]
        %v241 = vld [vmem:[%s1 + $0x20] sm:$0xff]
        %vm242 = vcmask 326656
        %v244 = vsel %vm242, %v205, 0
        %v247 = vsel %vm242, %v206, 0
        %v250 = vsel %vm242, %v207, 0
        %v253 = vsel %vm242, %v208, 0
        %v256 = vsel %vm242, %v209, 0
        %v259 = vsel %vm242, %v210, 0
        %v262 = vsel %vm242, %v211, 0
        %v265 = vsel %vm242, %v212, 0
        %v268 = vsel %vm242, %v213, 0
        %v271 = vsel %vm242, %v214, 0
        %v274 = vsel %vm242, %v215, 0
        %v277 = vsel %vm242, %v216, 0
        %v280 = vsel %vm242, %v217, 0
        %v283 = vsel %vm242, %v218, 0
        %v286 = vsel %vm242, %v219, 0
        %v289 = vsel %vm242, %v220, 0
        %v292 = vsel %vm242, %v221, 0
        %v295 = vsel %vm242, %v222, 0
        %v298 = vsel %vm242, %v223, 0
        %v301 = vsel %vm242, %v224, 0
        %v304 = vsel %vm242, %v225, 0
        %v307 = vsel %vm242, %v226, 0
        %v310 = vsel %vm242, %v227, 0
        %v313 = vsel %vm242, %v228, 0
        %v316 = vsel %vm242, %v229, 0
        %v319 = vsel %vm242, %v230, 0
        %v322 = vsel %vm242, %v231, 0
        %v325 = vsel %vm242, %v232, 0
        %v328 = vsel %vm242, %v233, 0
        %v331 = vsel %vm242, %v234, 0
        %v334 = vsel %vm242, %v235, 0
        %v337 = vsel %vm242, %v236, 0
        %339 = vmatpush.msra.mxu0 0.0
        %340 = vmatpush.msra.mxu0 0.0
        %341 = vmatpush.msra.mxu0 0.0
        %342 = vmatpush.msra.mxu0 0.0
        %343 = vmatpush.msra.mxu0 0.0
        %344 = vmatpush.msra.mxu0 0.0
        %345 = vmatpush.msra.mxu0 0.0
        %346 = vmatpush.msra.mxu0 0.0
        %347 = vmatpush.msra.mxu0 0.0
        %348 = vmatpush.msra.mxu0 0.0
        %349 = vmatpush.msra.mxu0 0.0
        %350 = vmatpush.msra.mxu0 %v241
        %351 = vmatpush.msra.mxu0 %v240
        %352 = vmatpush.msra.mxu0 %v239
        %353 = vmatpush.msra.mxu0 %v238
        %354 = vmatpush.msra.mxu0 %v237
        %355 = vmatmul.f32.gmra.mxu0 %v244
        %v356 = vpop.f32.mrf.mxu0
        %v357 = vadd.f32 0.0, %v356
        %358 = vmatmul.f32.gmra.mxu0 %v247
        %v359 = vpop.f32.mrf.mxu0
        %v360 = vadd.f32 0.0, %v359
        %361 = vmatmul.f32.gmra.mxu0 %v250
        %v362 = vpop.f32.mrf.mxu0
        %v363 = vadd.f32 0.0, %v362
        %364 = vmatmul.f32.gmra.mxu0 %v253
        %v365 = vpop.f32.mrf.mxu0
        %v366 = vadd.f32 0.0, %v365
        %367 = vmatmul.f32.gmra.mxu0 %v256
        %v368 = vpop.f32.mrf.mxu0
        %v369 = vadd.f32 0.0, %v368
        %370 = vmatmul.f32.gmra.mxu0 %v259
        %v371 = vpop.f32.mrf.mxu0
        %v372 = vadd.f32 0.0, %v371
        %373 = vmatmul.f32.gmra.mxu0 %v262
        %v374 = vpop.f32.mrf.mxu0
        %v375 = vadd.f32 0.0, %v374
        %376 = vmatmul.f32.gmra.mxu0 %v265
        %v377 = vpop.f32.mrf.mxu0
        %v378 = vadd.f32 0.0, %v377
        %379 = vmatmul.f32.gmra.mxu0 %v268
        %v380 = vpop.f32.mrf.mxu0
        %v381 = vadd.f32 0.0, %v380
        %382 = vmatmul.f32.gmra.mxu0 %v271
        %v383 = vpop.f32.mrf.mxu0
        %v384 = vadd.f32 0.0, %v383
        %385 = vmatmul.f32.gmra.mxu0 %v274
        %v386 = vpop.f32.mrf.mxu0
        %v387 = vadd.f32 0.0, %v386
        %388 = vmatmul.f32.gmra.mxu0 %v277
        %v389 = vpop.f32.mrf.mxu0
        %v390 = vadd.f32 0.0, %v389
        %391 = vmatmul.f32.gmra.mxu0 %v280
        %v392 = vpop.f32.mrf.mxu0
        %v393 = vadd.f32 0.0, %v392
        %394 = vmatmul.f32.gmra.mxu0 %v283
        %v395 = vpop.f32.mrf.mxu0
        %v396 = vadd.f32 0.0, %v395
        %397 = vmatmul.f32.gmra.mxu0 %v286
        %v398 = vpop.f32.mrf.mxu0
        %v399 = vadd.f32 0.0, %v398
        %400 = vmatmul.f32.gmra.mxu0 %v289
        %v401 = vpop.f32.mrf.mxu0
        %v402 = vadd.f32 0.0, %v401
        %403 = vmatmul.f32.gmra.mxu0 %v292
        %v404 = vpop.f32.mrf.mxu0
        %v405 = vadd.f32 0.0, %v404
        %406 = vmatmul.f32.gmra.mxu0 %v295
        %v407 = vpop.f32.mrf.mxu0
        %v408 = vadd.f32 0.0, %v407
        %409 = vmatmul.f32.gmra.mxu0 %v298
        %v410 = vpop.f32.mrf.mxu0
        %v411 = vadd.f32 0.0, %v410
        %412 = vmatmul.f32.gmra.mxu0 %v301
        %v413 = vpop.f32.mrf.mxu0
        %v414 = vadd.f32 0.0, %v413
        %415 = vmatmul.f32.gmra.mxu0 %v304
        %v416 = vpop.f32.mrf.mxu0
        %v417 = vadd.f32 0.0, %v416
        %418 = vmatmul.f32.gmra.mxu0 %v307
        %v419 = vpop.f32.mrf.mxu0
        %v420 = vadd.f32 0.0, %v419
        %421 = vmatmul.f32.gmra.mxu0 %v310
        %v422 = vpop.f32.mrf.mxu0
        %v423 = vadd.f32 0.0, %v422
        %424 = vmatmul.f32.gmra.mxu0 %v313
        %v425 = vpop.f32.mrf.mxu0
        %v426 = vadd.f32 0.0, %v425
        %427 = vmatmul.f32.gmra.mxu0 %v316
        %v428 = vpop.f32.mrf.mxu0
        %v429 = vadd.f32 0.0, %v428
        %430 = vmatmul.f32.gmra.mxu0 %v319
        %v431 = vpop.f32.mrf.mxu0
        %v432 = vadd.f32 0.0, %v431
        %433 = vmatmul.f32.gmra.mxu0 %v322
        %v434 = vpop.f32.mrf.mxu0
        %v435 = vadd.f32 0.0, %v434
        %436 = vmatmul.f32.gmra.mxu0 %v325
        %v437 = vpop.f32.mrf.mxu0
        %v438 = vadd.f32 0.0, %v437
        %439 = vmatmul.f32.gmra.mxu0 %v328
        %v440 = vpop.f32.mrf.mxu0
        %v441 = vadd.f32 0.0, %v440
        %442 = vmatmul.f32.gmra.mxu0 %v331
        %v443 = vpop.f32.mrf.mxu0
        %v444 = vadd.f32 0.0, %v443
        %445 = vmatmul.f32.gmra.mxu0 %v334
        %v446 = vpop.f32.mrf.mxu0
        %v447 = vadd.f32 0.0, %v446
        %448 = vmatmul.f32.gmra.mxu0 %v337
        %v449 = vpop.f32.mrf.mxu0
        %v450 = vadd.f32 0.0, %v449
        %451 = vdwg.mxu0
        %v452 = vld [vmem:[%s184] sm:$0x1]
        %v453 = vadd.f32 %v357, %v360
        %v454 = vadd.f32 %v453, %v363
        %v455 = vadd.f32 %v454, %v366
        %v456 = vadd.f32 %v455, %v369
        %v457 = vadd.f32 %v456, %v372
        %v458 = vadd.f32 %v457, %v375
        %v459 = vadd.f32 %v458, %v378
        %v460 = vadd.f32 %v459, %v381
        %v461 = vadd.f32 %v460, %v384
        %v462 = vadd.f32 %v461, %v387
        %v463 = vadd.f32 %v462, %v390
        %v464 = vadd.f32 %v463, %v393
        %v465 = vadd.f32 %v464, %v396
        %v466 = vadd.f32 %v465, %v399
        %v467 = vadd.f32 %v466, %v402
        %v468 = vadd.f32 %v467, %v405
        %v469 = vadd.f32 %v468, %v408
        %v470 = vadd.f32 %v469, %v411
        %v471 = vadd.f32 %v470, %v414
        %v472 = vadd.f32 %v471, %v417
        %v473 = vadd.f32 %v472, %v420
        %v474 = vadd.f32 %v473, %v423
        %v475 = vadd.f32 %v474, %v426
        %v476 = vadd.f32 %v475, %v429
        %v477 = vadd.f32 %v476, %v432
        %v478 = vadd.f32 %v477, %v435
        %v479 = vadd.f32 %v478, %v438
        %v480 = vadd.f32 %v479, %v441
        %v481 = vadd.f32 %v480, %v444
        %v482 = vadd.f32 %v481, %v447
        %v483 = vadd.f32 %v482, %v450
        %v484 = vrot.slane %v483, 4
        %v485 = vadd.f32 %v483, %v484
        %v486 = vrot.slane %v485, 2
        %v487 = vadd.f32 %v485, %v486
        %v488 = vrot.slane %v487, 1
        %v489 = vadd.f32 %v487, %v488
        %v490 = vadd.f32 %v452, %v489
        %491 = vst [vmem:[%s184] sm:$0x1] %v490
        %v492 = vld [vmem:[%s190] sm:$0x1]
        %v493 = vmul.f32 %v357, %v357
        %v494 = vmul.f32 %v360, %v360
        %v495 = vmul.f32 %v363, %v363
        %v496 = vmul.f32 %v366, %v366
        %v497 = vmul.f32 %v369, %v369
        %v498 = vmul.f32 %v372, %v372
        %v499 = vmul.f32 %v375, %v375
        %v500 = vmul.f32 %v378, %v378
        %v501 = vmul.f32 %v381, %v381
        %v502 = vmul.f32 %v384, %v384
        %v503 = vmul.f32 %v387, %v387
        %v504 = vmul.f32 %v390, %v390
        %v505 = vmul.f32 %v393, %v393
        %v506 = vmul.f32 %v396, %v396
        %v507 = vmul.f32 %v399, %v399
        %v508 = vmul.f32 %v402, %v402
        %v509 = vmul.f32 %v405, %v405
        %v510 = vmul.f32 %v408, %v408
        %v511 = vmul.f32 %v411, %v411
        %v512 = vmul.f32 %v414, %v414
        %v513 = vmul.f32 %v417, %v417
        %v514 = vmul.f32 %v420, %v420
        %v515 = vmul.f32 %v423, %v423
        %v516 = vmul.f32 %v426, %v426
        %v517 = vmul.f32 %v429, %v429
        %v518 = vmul.f32 %v432, %v432
        %v519 = vmul.f32 %v435, %v435
        %v520 = vmul.f32 %v438, %v438
        %v521 = vmul.f32 %v441, %v441
        %v522 = vmul.f32 %v444, %v444
        %v523 = vmul.f32 %v447, %v447
        %v524 = vmul.f32 %v450, %v450
        %v525 = vadd.f32 %v493, %v494
        %v526 = vadd.f32 %v525, %v495
        %v527 = vadd.f32 %v526, %v496
        %v528 = vadd.f32 %v527, %v497
        %v529 = vadd.f32 %v528, %v498
        %v530 = vadd.f32 %v529, %v499
        %v531 = vadd.f32 %v530, %v500
        %v532 = vadd.f32 %v531, %v501
        %v533 = vadd.f32 %v532, %v502
        %v534 = vadd.f32 %v533, %v503
        %v535 = vadd.f32 %v534, %v504
        %v536 = vadd.f32 %v535, %v505
        %v537 = vadd.f32 %v536, %v506
        %v538 = vadd.f32 %v537, %v507
        %v539 = vadd.f32 %v538, %v508
        %v540 = vadd.f32 %v539, %v509
        %v541 = vadd.f32 %v540, %v510
        %v542 = vadd.f32 %v541, %v511
        %v543 = vadd.f32 %v542, %v512
        %v544 = vadd.f32 %v543, %v513
        %v545 = vadd.f32 %v544, %v514
        %v546 = vadd.f32 %v545, %v515
        %v547 = vadd.f32 %v546, %v516
        %v548 = vadd.f32 %v547, %v517
        %v549 = vadd.f32 %v548, %v518
        %v550 = vadd.f32 %v549, %v519
        %v551 = vadd.f32 %v550, %v520
        %v552 = vadd.f32 %v551, %v521
        %v553 = vadd.f32 %v552, %v522
        %v554 = vadd.f32 %v553, %v523
        %v555 = vadd.f32 %v554, %v524
        %v556 = vrot.slane %v555, 4
        %v557 = vadd.f32 %v555, %v556
        %v558 = vrot.slane %v557, 2
        %v559 = vadd.f32 %v557, %v558
        %v560 = vrot.slane %v559, 1
        %v561 = vadd.f32 %v559, %v560
        %v562 = vadd.f32 %v492, %v561
        %563 = vst [vmem:[%s190] sm:$0x1] %v562
        %s564 = sand.u32 %s90, 1
        %s565 = scalar_lea.sflag [#allocation3], %s564
        %s566 = sand.u32 %s90, 1
        %s567 = scalar_lea.vmem [#allocation2], %s566
        %s568 = sand.u32 %s116, 1
        %s569 = scalar_lea.sflag [#allocation5], %s568
        %s570 = sand.u32 %s116, 1
        %s571 = scalar_lea.vmem [#allocation4], %s570
        // Predicated region
        $region33: #{tpu_custom_call.1} parent=27 // pred_check
          %p572 = pneg %p100
        $region34: #{tpu_custom_call.1} parent=27 // pred_check_branch
          %574 = sbr.rel (%p572) target = $region36
        $region35: #{tpu_custom_call.1} parent=27 // pred_region
          %576 = vsyncadd %s565, 0
          %s577 = scalar_lea.hbm %s2, %s25
          %s579 = sshll.u32 %s567, 4
          %s580 = int_to_ptr.vmem [resolvable:$true] %s579
          %s581 = sshll.u32 %s577, 4
          %s582 = int_to_ptr.hbm [resolvable:$true] %s581
          %584 = dma.vmem_to_hbm [thread:$0]  %s580, 16, %s582, %s565
        $region36: #{tpu_custom_call.1} parent=27 // pred_fallthru
          _
        // Predicated region
        $region37: #{tpu_custom_call.1} parent=27 // pred_check
          %p585 = pneg %p126
        $region38: #{tpu_custom_call.1} parent=27 // pred_check_branch
          %587 = sbr.rel (%p585) target = $region40
        $region39: #{tpu_custom_call.1} parent=27 // pred_region
          %589 = vsyncadd %s569, 0
          %s590 = scalar_lea.hbm %s3, %s25
          %s592 = sshll.u32 %s571, 4
          %s593 = int_to_ptr.vmem [resolvable:$true] %s592
          %s594 = sshll.u32 %s590, 4
          %s595 = int_to_ptr.hbm [resolvable:$true] %s594
          %597 = dma.vmem_to_hbm [thread:$0]  %s593, 16, %s595, %s569
        $region40: #{tpu_custom_call.1} parent=27 // pred_fallthru
          _
      $region28: #{tpu_custom_call.1} parent=5 // pred_fallthru
        _
      %p598 = scmp.le.s32.totalorder 2, %s16
      // Predicated region
      $region41: #{tpu_custom_call.1} parent=5 // pred_check
        %p599 = pneg %p598
      $region42: #{tpu_custom_call.1} parent=5 // pred_check_branch
        %601 = sbr.rel (%p599) target = $region44
      $region43: #{tpu_custom_call.1} parent=5 // pred_region
        %s602 = ssub.s32 %s16, 2
        // Predicated region
        $region45: #{tpu_custom_call.1} parent=43 // pred_check
          %p603 = pneg %p106
        $region46: #{tpu_custom_call.1} parent=43 // pred_check_branch
          %605 = sbr.rel (%p603) target = $region48
        $region47: #{tpu_custom_call.1} parent=43 // pred_region
          %s606 = sand.u32 %s91, 1
          %s607 = scalar_lea.sflag [#allocation3], %s606
          %s608 = sand.u32 %s91, 1
          %s609 = scalar_lea.vmem [#allocation2], %s608
          %611 = dma.done %s607, 16
        $region48: #{tpu_custom_call.1} parent=43 // pred_fallthru
          _
        // Predicated region
        $region49: #{tpu_custom_call.1} parent=43 // pred_check
          %p612 = pneg %p132
        $region50: #{tpu_custom_call.1} parent=43 // pred_check_branch
          %614 = sbr.rel (%p612) target = $region52
        $region51: #{tpu_custom_call.1} parent=43 // pred_region
          %s615 = sand.u32 %s117, 1
          %s616 = scalar_lea.sflag [#allocation5], %s615
          %s617 = sand.u32 %s117, 1
          %s618 = scalar_lea.vmem [#allocation4], %s617
          %620 = dma.done %s616, 16
        $region52: #{tpu_custom_call.1} parent=43 // pred_fallthru
          _
      $region44: #{tpu_custom_call.1} parent=5 // pred_fallthru
        _
    $region6: #{tpu_custom_call.1} parent=1 // loop_footer
      %s20 = sadd.s32 1, %s16
    $region7: #{tpu_custom_call.1} parent=1 // loop_footer_branch
      %15 = sbr.rel target = $region3
    $region8: #{tpu_custom_call.1} parent=1 // loop_exit
      _
    %621 = vsyncpa [#allocation3], 1
    %s622 = scalar_lea.sflag [#allocation3], 1
    %623 = vsyncpa %s622, 1
    %624 = vsyncpa [#allocation5], 1
    %s625 = scalar_lea.sflag [#allocation5], 1
    %626 = vsyncpa %s625, 1

</llo_original>
